<compile_context>
chip_gen: v7x
topology: tpu7x:2x2x1
jax: 0.10.0
libtpu: 0.0.40
codegen_flags: <defaults>
</compile_context>

<pallas_src>
import jax
import jax.numpy as jnp
from jax.experimental import pallas as pl
from jax.experimental.pallas import tpu as pltpu


_LANE = 128
_SUBLANE = 8
_BLOCK_BYTE_BUDGET = 2 << 20          # ~2 MiB per direction per grid step
_CHUNK_CANDIDATES = (32, 16, 8)       # sublane rows per register-blocked step


def _resblock_kernel(x_ref, w_ref, shift_ref, o_ref):
    """residue = BN(conv1x1(x)); out = relu(x + residue), one (C, rows, 128) block.

    x_ref:     (C_in,  rows, 128) activation block (VMEM), lane-dense.
    w_ref:     (C_out, C_in)      1x1 conv weight with BN scale folded in (SMEM).
    shift_ref: (C_out,)           folded BN shift = beta - mean*scale (SMEM).
    o_ref:     (C_out, rows, 128) output block (VMEM).
    """
    c_in, rows, _ = x_ref.shape
    c_out = o_ref.shape[0]            # wrapper asserts c_out == c_in

    def compute(row0, nrows):
        # Load each input-channel chunk once (f32), reuse for every output channel.
        xs = [x_ref[ci, pl.ds(row0, nrows), :].astype(jnp.float32)
              for ci in range(c_in)]
        for co in range(c_out):                       # unrolled: C is tiny
            # residue[co] = shift[co] + sum_ci w[co,ci] * x[ci]  (scalar*vector FMAs)
            res = shift_ref[co] + w_ref[co, 0] * xs[0]
            for ci in range(1, c_in):
                res = res + w_ref[co, ci] * xs[ci]
            # Dropout2d(p=0.0, eval) and nodes=Identity are no-ops; add + ReLU,
            # store this channel immediately (no sublane concatenate).
            o_ref[co, pl.ds(row0, nrows), :] = (
                jnp.maximum(xs[co] + res, 0.0).astype(o_ref.dtype))

    chunk = next((c for c in _CHUNK_CANDIDATES if rows > c and rows % c == 0), None)
    if chunk is None:
        compute(0, rows)                              # small block: single pass
    else:
        @pl.loop(0, rows // chunk)                    # vreg-sized register blocking
        def _(step):
            compute(pl.multiple_of(step * chunk, chunk), chunk)


def _pick_rows(rows_total, n_batch, channels, dtype_bytes,
               budget_bytes=_BLOCK_BYTE_BUDGET):
    """Rows (of 128 lanes) per block.

    Large enough to amortize the ~0.35us per-grid-step overhead, small enough
    that double-buffered in+out blocks fit the default scoped VMEM on every
    TPU generation (v5e: 16 MiB scoped, v7x: 64 MiB physical).
    """
    budget_rows = budget_bytes // (channels * _LANE * dtype_bytes)
    budget_rows = max(_SUBLANE, budget_rows - budget_rows % _SUBLANE)
    if rows_total <= budget_rows:
        rows = rows_total                      # full extent: always a legal block
    else:
        rows = budget_rows                     # fallback; wrapper pads rows up
        for cand in range(budget_rows, _SUBLANE - 1, -_SUBLANE):
            if rows_total % cand == 0:
                rows = cand
                break
    # Keep >= 2 balanced parallel steps when cheap, so both v7x TCs get work.
    if n_batch * pl.cdiv(rows_total, rows) < 2 and rows_total % (2 * _SUBLANE) == 0:
        rows = rows_total // 2
    return rows


@jax.jit
def residual_block_forward(x_nchw, w_conv, gamma, beta, running_mean,
                           running_var, eps=1e-5):
    """Fused ResidualBlock forward (eval mode).

    x_nchw: (N, C_in, H, W).  w_conv: (C_out, C_in, 1, 1) with C_out == C_in.
    Returns (N, C_out, H, W) in x_nchw.dtype (pass bf16 to halve HBM traffic).
    """
    n, c_in, h, w = x_nchw.shape
    c_out = w_conv.shape[0]
    assert c_out == c_in, "residual add requires matching channel counts"

    # Fold eval-mode BatchNorm into the conv weight:  BN(Wx) = (scale*W) x + shift.
    scale = gamma / jnp.sqrt(running_var + eps)                         # (C_out,)
    shift = (beta - running_mean * scale).astype(jnp.float32)           # (C_out,)
    w_fold = (w_conv.reshape(c_out, c_in) * scale[:, None]).astype(jnp.float32)

    # NCHW -> (N, C, rows, 128): free reshape when H*W % 128 == 0, else zero-pad.
    hw = h * w
    rows_total = pl.cdiv(hw, _LANE)
    rows = _pick_rows(rows_total, n, c_in, x_nchw.dtype.itemsize)
    rows_padded = pl.cdiv(rows_total, rows) * rows
    hw_padded = rows_padded * _LANE

    x3 = x_nchw.reshape(n, c_in, hw)
    if hw_padded != hw:
        x3 = jnp.pad(x3, ((0, 0), (0, 0), (0, hw_padded - hw)))
    x4 = x3.reshape(n, c_in, rows_padded, _LANE)

    grid = (n, rows_padded // rows)
    block = (None, c_in, rows, _LANE)

    out4 = pl.pallas_call(
        _resblock_kernel,
        out_shape=jax.ShapeDtypeStruct((n, c_out, rows_padded, _LANE), x4.dtype),
        grid_spec=pltpu.PrefetchScalarGridSpec(
            num_scalar_prefetch=0,
            grid=grid,
            in_specs=[
                # Activation block: batch dim squeezed, channels full, lane-dense.
                pl.BlockSpec(block, lambda i, j: (i, 0, j, 0)),
                # Tiny folded weight + shift: scalar reads from SMEM.
                pl.BlockSpec(memory_space=pltpu.MemorySpace.SMEM),
                pl.BlockSpec(memory_space=pltpu.MemorySpace.SMEM),
            ],
            out_specs=pl.BlockSpec(block, lambda i, j: (i, 0, j, 0)),
        ),
        compiler_params=pltpu.CompilerParams(
            dimension_semantics=("parallel", "parallel"),
            vmem_limit_bytes=32 * 1024 * 1024),
    )(x4, w_fold, shift)

    out = out4.reshape(n, c_out, hw_padded)
    if hw_padded != hw:
        out = out[:, :, :hw]
    return out.reshape(n, c_out, h, w)


def _reference(x_nchw, w_conv, gamma, beta, mean, var, eps=1e-5):
    """Plain-JAX reference of the PyTorch forward (eval mode)."""
    c_out, c_in = w_conv.shape[:2]
    n, _, h, w = x_nchw.shape
    x2d = jnp.transpose(x_nchw, (0, 2, 3, 1)).reshape(-1, c_in).astype(jnp.float32)
    res = x2d @ w_conv.reshape(c_out, c_in).T
    res = (res - mean) / jnp.sqrt(var + eps) * gamma + beta
    out = jnp.maximum(x2d + res, 0.0)
    return jnp.transpose(out.reshape(n, h, w, c_out), (0, 3, 1, 2))


if __name__ == "__main__":
    # ResidualBlock(in_channels=4, out_channels=2, stride=(1, 1), expansion=2,
    #               activation=nn.ReLU)
    # -> downsample = Conv2d(4, 4, 1, stride=(1,1), bias=False) + BatchNorm2d(4)
    #                 + Dropout2d(p=0.0)
    in_channels, out_channels, expansion = 4, 2, 2
    c_out = out_channels * expansion
    N, H, W = 2, 16, 16

    key = jax.random.PRNGKey(0)
    kx, kw, kg, kb, km, kv = jax.random.split(key, 6)

    x = jax.random.normal(kx, (N, in_channels, H, W), dtype=jnp.float32)
    w_conv = jax.random.normal(kw, (c_out, in_channels, 1, 1),
                               dtype=jnp.float32) * 0.5
    gamma = 1.0 + 0.1 * jax.random.normal(kg, (c_out,), dtype=jnp.float32)
    beta = 0.1 * jax.random.normal(kb, (c_out,), dtype=jnp.float32)
    running_mean = 0.1 * jax.random.normal(km, (c_out,), dtype=jnp.float32)
    running_var = 1.0 + 0.1 * jax.random.uniform(kv, (c_out,), dtype=jnp.float32)

    # 1) Module-spec shape (2, 4, 16, 16), f32.
    out = jax.block_until_ready(
        residual_block_forward(x, w_conv, gamma, beta, running_mean, running_var))
    ref = _reference(x, w_conv, gamma, beta, running_mean, running_var)
    assert out.shape == (N, in_channels, H, W)
    assert jnp.allclose(out, ref, atol=1e-5, rtol=1e-5), "mismatch vs reference (f32)"

    # 2) Larger image, N=1: exercises row tiling, the in-kernel chunk loop and
    #    the >=2-parallel-step split for the v7x megacore.
    x2 = jax.random.normal(kx, (1, in_channels, 64, 64), dtype=jnp.float32)
    out2 = jax.block_until_ready(
        residual_block_forward(x2, w_conv, gamma, beta, running_mean, running_var))
    ref2 = _reference(x2, w_conv, gamma, beta, running_mean, running_var)
    assert jnp.allclose(out2, ref2, atol=1e-5, rtol=1e-5), "mismatch (tiled)"

    # 3) H*W not a multiple of 128: exercises the pad/slice path.
    x3 = jax.random.normal(kx, (2, in_channels, 30, 30), dtype=jnp.float32)
    out3 = jax.block_until_ready(
        residual_block_forward(x3, w_conv, gamma, beta, running_mean, running_var))
    ref3 = _reference(x3, w_conv, gamma, beta, running_mean, running_var)
    assert jnp.allclose(out3, ref3, atol=1e-5, rtol=1e-5), "mismatch (padded)"

    # 4) bf16 I/O path (halves HBM bytes on this memory-bound op); in-kernel
    #    compute stays f32.
    out_bf = jax.block_until_ready(
        residual_block_forward(x.astype(jnp.bfloat16), w_conv, gamma, beta,
                               running_mean, running_var))
    assert out_bf.dtype == jnp.bfloat16
    assert jnp.allclose(out_bf.astype(jnp.float32), ref, atol=0.12, rtol=0.05), \
        "mismatch (bf16)"

    print("KERNEL_OK")
</pallas_src>

<mosaic_0001>
module attributes {stable_mosaic.version = 11 : i64} {
  func.func @_resblock_kernel(%arg0: i32, %arg1: i32, %arg2: memref<1x4x2x128xf32, #tpu.memory_space<vmem>>, %arg3: memref<4x4xf32, #tpu.memory_space<smem>>, %arg4: memref<4xf32, #tpu.memory_space<smem>>, %arg5: memref<1x4x2x128xf32, #tpu.memory_space<vmem>>) attributes {dimension_semantics = [#tpu.dimension_semantics<parallel>, #tpu.dimension_semantics<parallel>], iteration_bounds = array<i64: 2, 1>, scalar_prefetch = 0 : i64, scratch_operands = 0 : i64, tpu.core_type = #tpu.core_type<tc>, window_params = [{transform_indices = @transform_0, window_bounds = array<i64: 1, 4, 2, 128>}, {transform_indices = @transform_1, window_bounds = array<i64: 4, 4>}, {transform_indices = @transform_2, window_bounds = array<i64: 4>}, {transform_indices = @transform_3, window_bounds = array<i64: 1, 4, 2, 128>}]} {
    %c0 = arith.constant 0 : index
    %c0_0 = arith.constant 0 : index
    %c0_1 = arith.constant 0 : index
    %c0_2 = arith.constant 0 : index
    %0 = vector.load %arg2[%c0, %c0_0, %c0_1, %c0_2] : memref<1x4x2x128xf32, #tpu.memory_space<vmem>>, vector<1x1x2x128xf32>
    %1 = vector.shape_cast %0 : vector<1x1x2x128xf32> to vector<2x128xf32>
    %c0_3 = arith.constant 0 : index
    %c1 = arith.constant 1 : index
    %c0_4 = arith.constant 0 : index
    %c0_5 = arith.constant 0 : index
    %2 = vector.load %arg2[%c0_3, %c1, %c0_4, %c0_5] : memref<1x4x2x128xf32, #tpu.memory_space<vmem>>, vector<1x1x2x128xf32>
    %3 = vector.shape_cast %2 : vector<1x1x2x128xf32> to vector<2x128xf32>
    %c0_6 = arith.constant 0 : index
    %c2 = arith.constant 2 : index
    %c0_7 = arith.constant 0 : index
    %c0_8 = arith.constant 0 : index
    %4 = vector.load %arg2[%c0_6, %c2, %c0_7, %c0_8] : memref<1x4x2x128xf32, #tpu.memory_space<vmem>>, vector<1x1x2x128xf32>
    %5 = vector.shape_cast %4 : vector<1x1x2x128xf32> to vector<2x128xf32>
    %c0_9 = arith.constant 0 : index
    %c3 = arith.constant 3 : index
    %c0_10 = arith.constant 0 : index
    %c0_11 = arith.constant 0 : index
    %6 = vector.load %arg2[%c0_9, %c3, %c0_10, %c0_11] : memref<1x4x2x128xf32, #tpu.memory_space<vmem>>, vector<1x1x2x128xf32>
    %7 = vector.shape_cast %6 : vector<1x1x2x128xf32> to vector<2x128xf32>
    %c0_12 = arith.constant 0 : index
    %8 = memref.load %arg4[%c0_12] : memref<4xf32, #tpu.memory_space<smem>>
    %c0_13 = arith.constant 0 : index
    %c0_14 = arith.constant 0 : index
    %9 = memref.load %arg3[%c0_13, %c0_14] : memref<4x4xf32, #tpu.memory_space<smem>>
    %10 = vector.broadcast %9 : f32 to vector<2x128xf32>
    %11 = arith.mulf %10, %1 : vector<2x128xf32>
    %12 = vector.broadcast %8 : f32 to vector<2x128xf32>
    %13 = arith.addf %12, %11 : vector<2x128xf32>
    %c0_15 = arith.constant 0 : index
    %c1_16 = arith.constant 1 : index
    %14 = memref.load %arg3[%c0_15, %c1_16] : memref<4x4xf32, #tpu.memory_space<smem>>
    %15 = vector.broadcast %14 : f32 to vector<2x128xf32>
    %16 = arith.mulf %15, %3 : vector<2x128xf32>
    %17 = arith.addf %13, %16 : vector<2x128xf32>
    %c0_17 = arith.constant 0 : index
    %c2_18 = arith.constant 2 : index
    %18 = memref.load %arg3[%c0_17, %c2_18] : memref<4x4xf32, #tpu.memory_space<smem>>
    %19 = vector.broadcast %18 : f32 to vector<2x128xf32>
    %20 = arith.mulf %19, %5 : vector<2x128xf32>
    %21 = arith.addf %17, %20 : vector<2x128xf32>
    %c0_19 = arith.constant 0 : index
    %c3_20 = arith.constant 3 : index
    %22 = memref.load %arg3[%c0_19, %c3_20] : memref<4x4xf32, #tpu.memory_space<smem>>
    %23 = vector.broadcast %22 : f32 to vector<2x128xf32>
    %24 = arith.mulf %23, %7 : vector<2x128xf32>
    %25 = arith.addf %21, %24 : vector<2x128xf32>
    %26 = arith.addf %1, %25 : vector<2x128xf32>
    %cst = arith.constant 0.000000e+00 : f32
    %27 = vector.broadcast %cst : f32 to vector<2x128xf32>
    %28 = arith.maximumf %26, %27 : vector<2x128xf32>
    %c0_21 = arith.constant 0 : index
    %c0_22 = arith.constant 0 : index
    %c0_23 = arith.constant 0 : index
    %c0_24 = arith.constant 0 : index
    %29 = vector.load %arg5[%c0_21, %c0_22, %c0_23, %c0_24] : memref<1x4x2x128xf32, #tpu.memory_space<vmem>>, vector<1x1x2x128xf32>
    %30 = vector.shape_cast %29 : vector<1x1x2x128xf32> to vector<2x128xf32>
    %31 = vector.shape_cast %28 : vector<2x128xf32> to vector<1x1x2x128xf32>
    tpu.vector_store %arg5[%c0_21, %c0_22, %c0_23, %c0_24], %31 {strides = array<i32>} : memref<1x4x2x128xf32, #tpu.memory_space<vmem>>, vector<1x1x2x128xf32>,
    %c1_25 = arith.constant 1 : index
    %32 = memref.load %arg4[%c1_25] : memref<4xf32, #tpu.memory_space<smem>>
    %c1_26 = arith.constant 1 : index
    %c0_27 = arith.constant 0 : index
    %33 = memref.load %arg3[%c1_26, %c0_27] : memref<4x4xf32, #tpu.memory_space<smem>>
    %34 = vector.broadcast %33 : f32 to vector<2x128xf32>
    %35 = arith.mulf %34, %1 : vector<2x128xf32>
    %36 = vector.broadcast %32 : f32 to vector<2x128xf32>
    %37 = arith.addf %36, %35 : vector<2x128xf32>
    %c1_28 = arith.constant 1 : index
    %c1_29 = arith.constant 1 : index
    %38 = memref.load %arg3[%c1_28, %c1_29] : memref<4x4xf32, #tpu.memory_space<smem>>
    %39 = vector.broadcast %38 : f32 to vector<2x128xf32>
    %40 = arith.mulf %39, %3 : vector<2x128xf32>
    %41 = arith.addf %37, %40 : vector<2x128xf32>
    %c1_30 = arith.constant 1 : index
    %c2_31 = arith.constant 2 : index
    %42 = memref.load %arg3[%c1_30, %c2_31] : memref<4x4xf32, #tpu.memory_space<smem>>
    %43 = vector.broadcast %42 : f32 to vector<2x128xf32>
    %44 = arith.mulf %43, %5 : vector<2x128xf32>
    %45 = arith.addf %41, %44 : vector<2x128xf32>
    %c1_32 = arith.constant 1 : index
    %c3_33 = arith.constant 3 : index
    %46 = memref.load %arg3[%c1_32, %c3_33] : memref<4x4xf32, #tpu.memory_space<smem>>
    %47 = vector.broadcast %46 : f32 to vector<2x128xf32>
    %48 = arith.mulf %47, %7 : vector<2x128xf32>
    %49 = arith.addf %45, %48 : vector<2x128xf32>
    %50 = arith.addf %3, %49 : vector<2x128xf32>
    %cst_34 = arith.constant 0.000000e+00 : f32
    %51 = vector.broadcast %cst_34 : f32 to vector<2x128xf32>
    %52 = arith.maximumf %50, %51 : vector<2x128xf32>
    %c0_35 = arith.constant 0 : index
    %c1_36 = arith.constant 1 : index
    %c0_37 = arith.constant 0 : index
    %c0_38 = arith.constant 0 : index
    %53 = vector.load %arg5[%c0_35, %c1_36, %c0_37, %c0_38] : memref<1x4x2x128xf32, #tpu.memory_space<vmem>>, vector<1x1x2x128xf32>
    %54 = vector.shape_cast %53 : vector<1x1x2x128xf32> to vector<2x128xf32>
    %55 = vector.shape_cast %52 : vector<2x128xf32> to vector<1x1x2x128xf32>
    tpu.vector_store %arg5[%c0_35, %c1_36, %c0_37, %c0_38], %55 {strides = array<i32>} : memref<1x4x2x128xf32, #tpu.memory_space<vmem>>, vector<1x1x2x128xf32>,
    %c2_39 = arith.constant 2 : index
    %56 = memref.load %arg4[%c2_39] : memref<4xf32, #tpu.memory_space<smem>>
    %c2_40 = arith.constant 2 : index
    %c0_41 = arith.constant 0 : index
    %57 = memref.load %arg3[%c2_40, %c0_41] : memref<4x4xf32, #tpu.memory_space<smem>>
    %58 = vector.broadcast %57 : f32 to vector<2x128xf32>
    %59 = arith.mulf %58, %1 : vector<2x128xf32>
    %60 = vector.broadcast %56 : f32 to vector<2x128xf32>
    %61 = arith.addf %60, %59 : vector<2x128xf32>
    %c2_42 = arith.constant 2 : index
    %c1_43 = arith.constant 1 : index
    %62 = memref.load %arg3[%c2_42, %c1_43] : memref<4x4xf32, #tpu.memory_space<smem>>
    %63 = vector.broadcast %62 : f32 to vector<2x128xf32>
    %64 = arith.mulf %63, %3 : vector<2x128xf32>
    %65 = arith.addf %61, %64 : vector<2x128xf32>
    %c2_44 = arith.constant 2 : index
    %c2_45 = arith.constant 2 : index
    %66 = memref.load %arg3[%c2_44, %c2_45] : memref<4x4xf32, #tpu.memory_space<smem>>
    %67 = vector.broadcast %66 : f32 to vector<2x128xf32>
    %68 = arith.mulf %67, %5 : vector<2x128xf32>
    %69 = arith.addf %65, %68 : vector<2x128xf32>
    %c2_46 = arith.constant 2 : index
    %c3_47 = arith.constant 3 : index
    %70 = memref.load %arg3[%c2_46, %c3_47] : memref<4x4xf32, #tpu.memory_space<smem>>
    %71 = vector.broadcast %70 : f32 to vector<2x128xf32>
    %72 = arith.mulf %71, %7 : vector<2x128xf32>
    %73 = arith.addf %69, %72 : vector<2x128xf32>
    %74 = arith.addf %5, %73 : vector<2x128xf32>
    %cst_48 = arith.constant 0.000000e+00 : f32
    %75 = vector.broadcast %cst_48 : f32 to vector<2x128xf32>
    %76 = arith.maximumf %74, %75 : vector<2x128xf32>
    %c0_49 = arith.constant 0 : index
    %c2_50 = arith.constant 2 : index
    %c0_51 = arith.constant 0 : index
    %c0_52 = arith.constant 0 : index
    %77 = vector.load %arg5[%c0_49, %c2_50, %c0_51, %c0_52] : memref<1x4x2x128xf32, #tpu.memory_space<vmem>>, vector<1x1x2x128xf32>
    %78 = vector.shape_cast %77 : vector<1x1x2x128xf32> to vector<2x128xf32>
    %79 = vector.shape_cast %76 : vector<2x128xf32> to vector<1x1x2x128xf32>
    tpu.vector_store %arg5[%c0_49, %c2_50, %c0_51, %c0_52], %79 {strides = array<i32>} : memref<1x4x2x128xf32, #tpu.memory_space<vmem>>, vector<1x1x2x128xf32>,
    %c3_53 = arith.constant 3 : index
    %80 = memref.load %arg4[%c3_53] : memref<4xf32, #tpu.memory_space<smem>>
    %c3_54 = arith.constant 3 : index
    %c0_55 = arith.constant 0 : index
    %81 = memref.load %arg3[%c3_54, %c0_55] : memref<4x4xf32, #tpu.memory_space<smem>>
    %82 = vector.broadcast %81 : f32 to vector<2x128xf32>
    %83 = arith.mulf %82, %1 : vector<2x128xf32>
    %84 = vector.broadcast %80 : f32 to vector<2x128xf32>
    %85 = arith.addf %84, %83 : vector<2x128xf32>
    %c3_56 = arith.constant 3 : index
    %c1_57 = arith.constant 1 : index
    %86 = memref.load %arg3[%c3_56, %c1_57] : memref<4x4xf32, #tpu.memory_space<smem>>
    %87 = vector.broadcast %86 : f32 to vector<2x128xf32>
    %88 = arith.mulf %87, %3 : vector<2x128xf32>
    %89 = arith.addf %85, %88 : vector<2x128xf32>
    %c3_58 = arith.constant 3 : index
    %c2_59 = arith.constant 2 : index
    %90 = memref.load %arg3[%c3_58, %c2_59] : memref<4x4xf32, #tpu.memory_space<smem>>
    %91 = vector.broadcast %90 : f32 to vector<2x128xf32>
    %92 = arith.mulf %91, %5 : vector<2x128xf32>
    %93 = arith.addf %89, %92 : vector<2x128xf32>
    %c3_60 = arith.constant 3 : index
    %c3_61 = arith.constant 3 : index
    %94 = memref.load %arg3[%c3_60, %c3_61] : memref<4x4xf32, #tpu.memory_space<smem>>
    %95 = vector.broadcast %94 : f32 to vector<2x128xf32>
    %96 = arith.mulf %95, %7 : vector<2x128xf32>
    %97 = arith.addf %93, %96 : vector<2x128xf32>
    %98 = arith.addf %7, %97 : vector<2x128xf32>
    %cst_62 = arith.constant 0.000000e+00 : f32
    %99 = vector.broadcast %cst_62 : f32 to vector<2x128xf32>
    %100 = arith.maximumf %98, %99 : vector<2x128xf32>
    %c0_63 = arith.constant 0 : index
    %c3_64 = arith.constant 3 : index
    %c0_65 = arith.constant 0 : index
    %c0_66 = arith.constant 0 : index
    %101 = vector.load %arg5[%c0_63, %c3_64, %c0_65, %c0_66] : memref<1x4x2x128xf32, #tpu.memory_space<vmem>>, vector<1x1x2x128xf32>
    %102 = vector.shape_cast %101 : vector<1x1x2x128xf32> to vector<2x128xf32>
    %103 = vector.shape_cast %100 : vector<2x128xf32> to vector<1x1x2x128xf32>
    tpu.vector_store %arg5[%c0_63, %c3_64, %c0_65, %c0_66], %103 {strides = array<i32>} : memref<1x4x2x128xf32, #tpu.memory_space<vmem>>, vector<1x1x2x128xf32>,
    return
  }
  func.func @transform_0(%arg0: i32, %arg1: i32) -> (i32, i32, i32, i32) {
    %c0_i32 = arith.constant 0 : i32
    %c0_i32_0 = arith.constant 0 : i32
    %c0_i32_1 = arith.constant 0 : i32
    return %arg0, %c0_i32, %arg1, %c0_i32_0 : i32, i32, i32, i32
  }
  func.func @transform_1(%arg0: i32, %arg1: i32) -> (i32, i32) {
    %c0_i32 = arith.constant 0 : i32
    %c0_i32_0 = arith.constant 0 : i32
    %c0_i32_1 = arith.constant 0 : i32
    return %c0_i32, %c0_i32_0 : i32, i32
  }
  func.func @transform_2(%arg0: i32, %arg1: i32) -> i32 {
    %c0_i32 = arith.constant 0 : i32
    %c0_i32_0 = arith.constant 0 : i32
    return %c0_i32 : i32
  }
  func.func @transform_3(%arg0: i32, %arg1: i32) -> (i32, i32, i32, i32) {
    %c0_i32 = arith.constant 0 : i32
    %c0_i32_0 = arith.constant 0 : i32
    %c0_i32_1 = arith.constant 0 : i32
    return %arg0, %c0_i32, %arg1, %c0_i32_0 : i32, i32, i32, i32
  }
}

</mosaic_0001>

<llo_original>
// kernel: residual_block_forward.1
$region0: #{residual_block_forward.1}
  #allocation0 [shape = 'u32[]', space=smem, size = 0x4, offset = 0x4, fixed_abs, tag = 'smem constant byte address 0x4 - core index']
  #allocation1 [shape = 'u32[144,128]{1,0:T(1,128)}', space=vmem, size = 0x12000, scoped, tag = 'internal scratch']
  %s0 = inlined_call_operand.vmem [shape: f32[2,4,2,128], index: 0, kind: input, shape index: {}]
  %s1 = inlined_call_operand.vmem [shape: f32[4,4], index: 1, kind: input, shape index: {}]
  %s2 = inlined_call_operand.vmem [shape: f32[4], index: 2, kind: input, shape index: {}]
  %s3 = inlined_call_operand.vmem [shape: f32[2,4,2,128], index: 3, kind: output, shape index: {}]
  %s4 = sld [smem:[#allocation0]]
  $region53: #{residual_block_forward.1} parent=0
    _
  %s6 = ssub.s32 1, %s4
  %s7 = scalar_select 0, %s6, %s4
  $region1: #{residual_block_forward.1} parent=0
    #allocation2 [shape = 'u8[2048]{0}', space=smem, size = 0x800, scoped, tag = 'input window, operand 1, single buffered']
    #allocation3 [shape = 's32[2]{0}', space=sflag, size = 0x8, scoped, tag = 'scoped memory for residual_block_forward.1']
    #allocation4 [shape = 'u8[512]{0}', space=smem, size = 0x200, scoped, tag = 'input window, operand 2, single buffered']
    #allocation5 [shape = 's32[1]{0}', space=sflag, size = 0x4, scoped, tag = 'scoped memory for residual_block_forward.1']
    %8 = vsyncpa [#allocation3], 0
    %9 = vsyncpa [#allocation5], 0
    loop: start=0, step=1, limit=4
    $region2: #{residual_block_forward.1} parent=1 // loop_pre_header
      _
    $region3: #{residual_block_forward.1} parent=1 // loop_header
      %s11 = sphi 0, %s15
      %p12 = scmp.ge.s32.totalorder %s11, 4
      %s18 = sphi 0, %s30
      %s19 = sphi 0, %s26
      %s20 = sphi 0, %s18
      %s21 = sphi 0, %s19
      %s22 = sphi 0, %s20
      %s23 = sphi 0, %s21
      %s35 = sphi 0, %s37
      %s38 = sphi 0, %s35
      %s39 = sphi 0, %s38
      %s55 = sphi 0, %s39
      %s59 = sphi 0, %s59
      %s61 = sphi 0, %s59
      %s62 = sphi 0, %s61
      %s76 = sphi 0, %s62
      %s80 = sphi 0, %s80
      %s82 = sphi 0, %s80
      %s83 = sphi 0, %s82
      %s97 = sphi 0, %s83
      %s105 = sphi 0, %s107
      %s108 = sphi 0, %s105
      %s109 = sphi 0, %s108
      %s125 = sphi 0, %s109
    $region4: #{residual_block_forward.1} parent=1 // loop_header_branch
      %14 = sbr.rel (%p12) target = $region8
    $region5: #{residual_block_forward.1} parent=1 // loop_body
      %s16 = ssub.s32 %s11, 1
      %s17 = ssub.s32 %s11, 2
      %s24 = sadd.s32 1, %s19
      %p25 = scmp.ge.s32.totalorder %s24, 1
      %s26 = scalar_select %p25, 0, %s24
      %s27 = sadd.s32 1, %s18
      %s28 = scalar_select %p25, %s27, %s18
      %p29 = scmp.ge.s32.totalorder %s28, 2
      %s30 = scalar_select %p29, 0, %s28
      %s31 = ssub.s32 %s18, %s30
      %s32 = ssub.s32 %s19, %s26
      %s33 = sor.u32 %s31, %s32
      %p34 = scmp.eq.s32.totalorder %s33, 0
      %s36 = sadd.s32 %s35, 1
      %s37 = scalar_select %p34, %s35, %s36
      %p40 = pneg %p34
      %p41 = scmp.eq.s32.totalorder %s11, 1
      %p42 = por %p40, %p41
      %p43 = scmp.ne.s32.totalorder %s35, %s38
      %p44 = scmp.eq.s32.totalorder %s11, 0
      %p45 = por %p43, %p44
      %p46 = scmp.ne.s32.totalorder %s35, %s38
      %p47 = scmp.eq.s32.totalorder %s16, 1
      %p48 = por %p46, %p47
      %p49 = scmp.ne.s32.totalorder %s38, %s39
      %p50 = scmp.eq.s32.totalorder %s16, 0
      %p51 = por %p49, %p50
      %p52 = scmp.ne.s32.totalorder %s38, %s39
      %p53 = scmp.eq.s32.totalorder %s17, 1
      %p54 = por %p52, %p53
      %p56 = scmp.ne.s32.totalorder %s39, %s55
      %p57 = scmp.eq.s32.totalorder %s17, 0
      %p58 = por %p56, %p57
      %s60 = sadd.s32 %s59, 1
      %p63 = scmp.eq.s32.totalorder %s11, 1
      %p64 = scmp.ne.s32.totalorder %s59, %s61
      %p65 = scmp.eq.s32.totalorder %s11, 0
      %p66 = por %p64, %p65
      %p67 = scmp.ne.s32.totalorder %s59, %s61
      %p68 = scmp.eq.s32.totalorder %s16, 1
      %p69 = por %p67, %p68
      %p70 = scmp.ne.s32.totalorder %s61, %s62
      %p71 = scmp.eq.s32.totalorder %s16, 0
      %p72 = por %p70, %p71
      %p73 = scmp.ne.s32.totalorder %s61, %s62
      %p74 = scmp.eq.s32.totalorder %s17, 1
      %p75 = por %p73, %p74
      %p77 = scmp.ne.s32.totalorder %s62, %s76
      %p78 = scmp.eq.s32.totalorder %s17, 0
      %p79 = por %p77, %p78
      %s81 = sadd.s32 %s80, 1
      %p84 = scmp.eq.s32.totalorder %s11, 1
      %p85 = scmp.ne.s32.totalorder %s80, %s82
      %p86 = scmp.eq.s32.totalorder %s11, 0
      %p87 = por %p85, %p86
      %p88 = scmp.ne.s32.totalorder %s80, %s82
      %p89 = scmp.eq.s32.totalorder %s16, 1
      %p90 = por %p88, %p89
      %p91 = scmp.ne.s32.totalorder %s82, %s83
      %p92 = scmp.eq.s32.totalorder %s16, 0
      %p93 = por %p91, %p92
      %p94 = scmp.ne.s32.totalorder %s82, %s83
      %p95 = scmp.eq.s32.totalorder %s17, 1
      %p96 = por %p94, %p95
      %p98 = scmp.ne.s32.totalorder %s83, %s97
      %p99 = scmp.eq.s32.totalorder %s17, 0
      %p100 = por %p98, %p99
      %s101 = ssub.s32 %s18, %s30
      %s102 = ssub.s32 %s19, %s26
      %s103 = sor.u32 %s101, %s102
      %p104 = scmp.eq.s32.totalorder %s103, 0
      %s106 = sadd.s32 %s105, 1
      %s107 = scalar_select %p104, %s105, %s106
      %p110 = pneg %p104
      %p111 = scmp.eq.s32.totalorder %s11, 1
      %p112 = por %p110, %p111
      %p113 = scmp.ne.s32.totalorder %s105, %s108
      %p114 = scmp.eq.s32.totalorder %s11, 0
      %p115 = por %p113, %p114
      %p116 = scmp.ne.s32.totalorder %s105, %s108
      %p117 = scmp.eq.s32.totalorder %s16, 1
      %p118 = por %p116, %p117
      %p119 = scmp.ne.s32.totalorder %s108, %s109
      %p120 = scmp.eq.s32.totalorder %s16, 0
      %p121 = por %p119, %p120
      %p122 = scmp.ne.s32.totalorder %s108, %s109
      %p123 = scmp.eq.s32.totalorder %s17, 1
      %p124 = por %p122, %p123
      %p126 = scmp.ne.s32.totalorder %s109, %s125
      %p127 = scmp.eq.s32.totalorder %s17, 0
      %p128 = por %p126, %p127
      %p129 = scmp.le.s32.totalorder 1, %s11
      %p130 = scmp.lt.s32.totalorder %s11, 3
      %p131 = pnand %p129, %p130
      %p132 = pneg %p131
      // Predicated region
      $region9: #{residual_block_forward.1} parent=5 // pred_check
        _
      $region10: #{residual_block_forward.1} parent=5 // pred_check_branch
        %134 = sbr.rel (%p131) target = $region12
      $region11: #{residual_block_forward.1} parent=5 // pred_region
        %s135 = ssub.s32 %s11, 1
        // Predicated region
        $region13: #{residual_block_forward.1} parent=11 // pred_check
          %p136 = pneg %p72
        $region14: #{residual_block_forward.1} parent=11 // pred_check_branch
          %138 = sbr.rel (%p136) target = $region16
        $region15: #{residual_block_forward.1} parent=11 // pred_region
          %s140 = ssub.s32 64, 64
          %141 = vsyncadd [#allocation3], %s140
          %s143 = sshll.u32 %s1, 4
          %s144 = int_to_ptr.vmem [resolvable:$true] %s143
          %146 = dma.vmem_to_smem %s144, 64, [#allocation2], [#allocation3]
        $region16: #{residual_block_forward.1} parent=11 // pred_fallthru
          _
        // Predicated region
        $region17: #{residual_block_forward.1} parent=11 // pred_check
          %p147 = pneg %p93
        $region18: #{residual_block_forward.1} parent=11 // pred_check_branch
          %149 = sbr.rel (%p147) target = $region20
        $region19: #{residual_block_forward.1} parent=11 // pred_region
          %s151 = ssub.s32 16, 16
          %152 = vsyncadd [#allocation5], %s151
          %s154 = sshll.u32 %s2, 4
          %s155 = int_to_ptr.vmem [resolvable:$true] %s154
          %157 = dma.vmem_to_smem %s155, 16, [#allocation4], [#allocation5]
        $region20: #{residual_block_forward.1} parent=11 // pred_fallthru
          _
      $region12: #{residual_block_forward.1} parent=5 // pred_fallthru
        _
      %p158 = scmp.lt.s32.totalorder %s11, 2
      // Predicated region
      $region21: #{residual_block_forward.1} parent=5 // pred_check
        %p159 = pneg %p158
      $region22: #{residual_block_forward.1} parent=5 // pred_check_branch
        %161 = sbr.rel (%p159) target = $region24
      $region23: #{residual_block_forward.1} parent=5 // pred_region
        // Predicated region
        $region25: #{residual_block_forward.1} parent=23 // pred_check
          %p162 = pneg %p45
        $region26: #{residual_block_forward.1} parent=23 // pred_check_branch
          %164 = sbr.rel (%p162) target = $region28
        $region27: #{residual_block_forward.1} parent=23 // pred_region
          %p165 = scmp.lt.s32.totalorder %s18, 1
          %s166 = scalar_select %p165, %s18, 1
          %p167 = scmp.lt.s32.totalorder %s19, 0
          %s168 = scalar_select %p167, %s19, 0
          %s169 = smul.addr %s166, 4
          %s170 = sadd.s32 %s168, %s169
          %s171 = smul.addr %s170, 2
          %s172 = scalar_lea.vmem %s0, %s171
        $region28: #{residual_block_forward.1} parent=23 // pred_fallthru
          _
      $region24: #{residual_block_forward.1} parent=5 // pred_fallthru
        _
      %p173 = scmp.le.s32.totalorder 1, %s11
      %p174 = scmp.lt.s32.totalorder %s11, 3
      %p175 = pnand %p173, %p174
      %p176 = pneg %p175
      // Predicated region
      $region29: #{residual_block_forward.1} parent=5 // pred_check
        _
      $region30: #{residual_block_forward.1} parent=5 // pred_check_branch
        %178 = sbr.rel (%p175) target = $region32
      $region31: #{residual_block_forward.1} parent=5 // pred_region
        %s179 = ssub.s32 %s11, 1
        // Predicated region
        $region33: #{residual_block_forward.1} parent=31 // pred_check
          %p180 = pneg %p72
        $region34: #{residual_block_forward.1} parent=31 // pred_check_branch
          %182 = sbr.rel (%p180) target = $region36
        $region35: #{residual_block_forward.1} parent=31 // pred_region
          %183 = dma.done [#allocation3], 64
        $region36: #{residual_block_forward.1} parent=31 // pred_fallthru
          _
        // Predicated region
        $region37: #{residual_block_forward.1} parent=31 // pred_check
          %p184 = pneg %p93
        $region38: #{residual_block_forward.1} parent=31 // pred_check_branch
          %186 = sbr.rel (%p184) target = $region40
        $region39: #{residual_block_forward.1} parent=31 // pred_region
          %187 = dma.done [#allocation5], 16
        $region40: #{residual_block_forward.1} parent=31 // pred_fallthru
          _
        %188 = sfence
        %p189 = scmp.lt.s32.totalorder %s20, 1
        %s190 = scalar_select %p189, %s20, 1
        %p191 = scmp.lt.s32.totalorder %s21, 0
        %s192 = scalar_select %p191, %s21, 0
        %s193 = smul.addr %s190, 4
        %s194 = sadd.s32 %s192, %s193
        %s195 = smul.addr %s194, 2
        %s196 = scalar_lea.vmem %s0, %s195
        %p197 = pneg %p51
        %p198 = pneg %p48
        %p199 = pneg %p72
        %p200 = pneg %p69
        %p201 = pneg %p93
        %p202 = pneg %p90
        %p203 = pneg %p121
        %p204 = pneg %p118
        %p205 = scmp.lt.s32.totalorder %s20, 1
        %s206 = scalar_select %p205, %s20, 1
        %p207 = scmp.lt.s32.totalorder %s21, 0
        %s208 = scalar_select %p207, %s21, 0
        %s209 = smul.addr %s206, 4
        %s210 = sadd.s32 %s208, %s209
        %s211 = smul.addr %s210, 2
        %s212 = scalar_lea.vmem %s3, %s211
        %p213 = scmp.lt.s32.totalorder %s20, 1
        %s214 = scalar_select %p213, %s20, 1
        %p215 = scmp.lt.s32.totalorder %s21, 0
        %s216 = scalar_select %p215, %s21, 0
        %s217 = smul.addr %s214, 4
        %s218 = sadd.s32 %s216, %s217
        %s219 = smul.addr %s218, 2
        %s220 = scalar_lea.vmem %s0, %s219
        %p221 = scmp.lt.s32.totalorder %s20, 1
        %s222 = scalar_select %p221, %s20, 1
        %p223 = scmp.lt.s32.totalorder %s21, 0
        %s224 = scalar_select %p223, %s21, 0
        %s225 = smul.addr %s222, 4
        %s226 = sadd.s32 %s224, %s225
        %s227 = smul.addr %s226, 2
        %s228 = scalar_lea.vmem %s3, %s227
        %v229 = vld [vmem:[%s220] sm:$0x3]
        %s230 = scalar_lea.vmem %s220, 2
        %v231 = vld [vmem:[%s230] sm:$0x3]
        %s232 = scalar_lea.vmem %s220, 4
        %v233 = vld [vmem:[%s232] sm:$0x3]
        %s234 = scalar_lea.vmem %s220, 6
        %v235 = vld [vmem:[%s234] sm:$0x3]
        %s236 = sld [smem:[#allocation4]]
        %s237 = sld [smem:[#allocation2]]
        %v238 = vstv %s237
        %v239 = vmul.f32 %v238, %v229
        %v240 = vstv %s236
        %v241 = vadd.f32 %v240, %v239
        %s242 = sld [smem:[#allocation2 + $0x1]]
        %v243 = vstv %s242
        %v244 = vmul.f32 %v243, %v231
        %v245 = vadd.f32 %v241, %v244
        %s246 = sld [smem:[#allocation2 + $0x2]]
        %v247 = vstv %s246
        %v248 = vmul.f32 %v247, %v233
        %v249 = vadd.f32 %v245, %v248
        %s250 = sld [smem:[#allocation2 + $0x3]]
        %v251 = vstv %s250
        %v252 = vmul.f32 %v251, %v235
        %v253 = vadd.f32 %v249, %v252
        %v254 = vadd.f32 %v229, %v253
        %v255 = vmax.f32 %v254, 0.0
        %256 = vst [vmem:[%s228] sm:$0x3] %v255
        %s257 = sld [smem:[#allocation4 + $0x1]]
        %s258 = sld [smem:[#allocation2 + $0x80]]
        %v259 = vstv %s258
        %v260 = vmul.f32 %v259, %v229
        %v261 = vstv %s257
        %v262 = vadd.f32 %v261, %v260
        %s263 = sld [smem:[#allocation2 + $0x81]]
        %v264 = vstv %s263
        %v265 = vmul.f32 %v264, %v231
        %v266 = vadd.f32 %v262, %v265
        %s267 = sld [smem:[#allocation2 + $0x82]]
        %v268 = vstv %s267
        %v269 = vmul.f32 %v268, %v233
        %v270 = vadd.f32 %v266, %v269
        %s271 = sld [smem:[#allocation2 + $0x83]]
        %v272 = vstv %s271
        %v273 = vmul.f32 %v272, %v235
        %v274 = vadd.f32 %v270, %v273
        %v275 = vadd.f32 %v231, %v274
        %v276 = vmax.f32 %v275, 0.0
        %s277 = scalar_lea.vmem %s228, 2
        %278 = vst [vmem:[%s277] sm:$0x3] %v276
        %s279 = sld [smem:[#allocation4 + $0x2]]
        %s280 = sld [smem:[#allocation2 + $0x100]]
        %v281 = vstv %s280
        %v282 = vmul.f32 %v281, %v229
        %v283 = vstv %s279
        %v284 = vadd.f32 %v283, %v282
        %s285 = sld [smem:[#allocation2 + $0x101]]
        %v286 = vstv %s285
        %v287 = vmul.f32 %v286, %v231
        %v288 = vadd.f32 %v284, %v287
        %s289 = sld [smem:[#allocation2 + $0x102]]
        %v290 = vstv %s289
        %v291 = vmul.f32 %v290, %v233
        %v292 = vadd.f32 %v288, %v291
        %s293 = sld [smem:[#allocation2 + $0x103]]
        %v294 = vstv %s293
        %v295 = vmul.f32 %v294, %v235
        %v296 = vadd.f32 %v292, %v295
        %v297 = vadd.f32 %v233, %v296
        %v298 = vmax.f32 %v297, 0.0
        %s299 = scalar_lea.vmem %s228, 4
        %300 = vst [vmem:[%s299] sm:$0x3] %v298
        %s301 = sld [smem:[#allocation4 + $0x3]]
        %s302 = sld [smem:[#allocation2 + $0x180]]
        %v303 = vstv %s302
        %v304 = vmul.f32 %v303, %v229
        %v305 = vstv %s301
        %v306 = vadd.f32 %v305, %v304
        %s307 = sld [smem:[#allocation2 + $0x181]]
        %v308 = vstv %s307
        %v309 = vmul.f32 %v308, %v231
        %v310 = vadd.f32 %v306, %v309
        %s311 = sld [smem:[#allocation2 + $0x182]]
        %v312 = vstv %s311
        %v313 = vmul.f32 %v312, %v233
        %v314 = vadd.f32 %v310, %v313
        %s315 = sld [smem:[#allocation2 + $0x183]]
        %v316 = vstv %s315
        %v317 = vmul.f32 %v316, %v235
        %v318 = vadd.f32 %v314, %v317
        %v319 = vadd.f32 %v235, %v318
        %v320 = vmax.f32 %v319, 0.0
        %s321 = scalar_lea.vmem %s228, 6
        %322 = vst [vmem:[%s321] sm:$0x3] %v320
        %p323 = scmp.lt.s32.totalorder %s20, 1
        %s324 = scalar_select %p323, %s20, 1
        %p325 = scmp.lt.s32.totalorder %s21, 0
        %s326 = scalar_select %p325, %s21, 0
        %s327 = smul.addr %s324, 4
        %s328 = sadd.s32 %s326, %s327
        %s329 = smul.addr %s328, 2
        %s330 = scalar_lea.vmem %s3, %s329
        // Predicated region
        $region41: #{residual_block_forward.1} parent=31 // pred_check
          %p331 = pneg %p118
        $region42: #{residual_block_forward.1} parent=31 // pred_check_branch
          %333 = sbr.rel (%p331) target = $region44
        $region43: #{residual_block_forward.1} parent=31 // pred_region
          _
        $region44: #{residual_block_forward.1} parent=31 // pred_fallthru
          _
      $region32: #{residual_block_forward.1} parent=5 // pred_fallthru
        _
      %p334 = scmp.le.s32.totalorder 2, %s11
      // Predicated region
      $region45: #{residual_block_forward.1} parent=5 // pred_check
        %p335 = pneg %p334
      $region46: #{residual_block_forward.1} parent=5 // pred_check_branch
        %337 = sbr.rel (%p335) target = $region48
      $region47: #{residual_block_forward.1} parent=5 // pred_region
        %s338 = ssub.s32 %s11, 2
        // Predicated region
        $region49: #{residual_block_forward.1} parent=47 // pred_check
          %p339 = pneg %p124
        $region50: #{residual_block_forward.1} parent=47 // pred_check_branch
          %341 = sbr.rel (%p339) target = $region52
        $region51: #{residual_block_forward.1} parent=47 // pred_region
          %p342 = scmp.lt.s32.totalorder %s22, 1
          %s343 = scalar_select %p342, %s22, 1
          %p344 = scmp.lt.s32.totalorder %s23, 0
          %s345 = scalar_select %p344, %s23, 0
          %s346 = smul.addr %s343, 4
          %s347 = sadd.s32 %s345, %s346
          %s348 = smul.addr %s347, 2
          %s349 = scalar_lea.vmem %s3, %s348
        $region52: #{residual_block_forward.1} parent=47 // pred_fallthru
          _
      $region48: #{residual_block_forward.1} parent=5 // pred_fallthru
        _
    $region6: #{residual_block_forward.1} parent=1 // loop_footer
      %s15 = sadd.s32 1, %s11
    $region7: #{residual_block_forward.1} parent=1 // loop_footer_branch
      %10 = sbr.rel target = $region3
    $region8: #{residual_block_forward.1} parent=1 // loop_exit
      _
    %350 = vsyncpa [#allocation3], 1
    %s351 = scalar_lea.sflag [#allocation3], 1
    %352 = vsyncpa %s351, 1
    %353 = vsyncpa [#allocation5], 1

</llo_original>
